<compile_context>
chip_gen: v5e
topology: v5e:2x2
jax: 0.10.0
libtpu: 0.0.40
codegen_flags: <defaults>
</compile_context>

<pallas_src>
import functools

import jax
import jax.numpy as jnp
from jax import lax
from jax.experimental import pallas as pl
from jax.experimental.pallas import tpu as pltpu

_LANE = 128      # vreg lane width
_SUBLANE = 8     # vreg sublane width
_NEG_BIG = -1e30   # softmax mask value (finite: avoids inf-inf -> NaN)
_UNROLL_LIMIT = 8  # full Python unroll of the recurrence up to this depth


def _round_up(n: int, m: int) -> int:
    return ((n + m - 1) // m) * m


def _pad2(a, rows: int, cols: int):
    """Zero-pad a 2-D array up to (rows, cols)."""
    return jnp.pad(a, ((0, rows - a.shape[0]), (0, cols - a.shape[1])))


def _rnn_kernel(x_ref, h_ref, wx_ref, wh_ref, b_ref, out_ref, hout_ref,
                *, hidden_num: int, hp: int):
    """Single-program kernel; all operands resident in VMEM.

    wx_ref: (Inp, Hp+Op) = [Wx_ih | Wx_io]
    wh_ref: (Hp,  Hp+Op) = [Wh_ih | Wh_io]
    b_ref : (1,   Hp+Op) = [b_ih  | b_io  | -1e30 padding]   (mask baked in)
    """
    x = x_ref[...]                       # (Bp, Inp)
    h = h_ref[...]                       # (Bp, Hp)
    wh_cat = wh_ref[...]                 # (Hp, Hp+Op)

    # Fused, loop-invariant x-side term (one wide MXU matmul), bias included.
    xb_full = (jnp.dot(x, wx_ref[...], preferred_element_type=jnp.float32)
               + b_ref[...])             # (Bp, Hp+Op)
    xb_h = xb_full[:, :hp]               # (Bp, Hp): x @ Wx_ih + b_ih
    xb_o = xb_full[:, hp:]               # (Bp, Op): x @ Wx_io + b_io (masked)

    # Recurrent weight view (static lane-tile-aligned slice, hoisted).
    wihh = wh_cat[:, :hp]                # (Hp, Hp)

    # (hidden_num - 1) intermediate updates; the final one is fused below.
    n_steps = hidden_num - 1
    def step(_, h_cur):
        return xb_h + jnp.dot(h_cur, wihh, preferred_element_type=jnp.float32)
    if n_steps <= _UNROLL_LIMIT:
        for _ in range(n_steps):
            h = step(0, h)
    else:
        h = lax.fori_loop(0, n_steps, step, h, unroll=2)

    # Final step fused with the output head: one (Bp,Hp)x(Hp,Hp+Op) matmul.
    hc = jnp.dot(h, wh_cat, preferred_element_type=jnp.float32)  # (Bp, Hp+Op)
    hout_ref[...] = xb_h + hc[:, :hp]    # hidden after hidden_num updates

    # Logits on combined = cat(x, h_before_final_update); padded lanes = -1e30.
    logits = xb_o + hc[:, hp:]           # (Bp, Op)
    m = jnp.max(logits, axis=1, keepdims=True)
    shifted = logits - m
    lse = jnp.log(jnp.sum(jnp.exp(shifted), axis=1, keepdims=True))
    out_ref[...] = shifted - lse


def prepare_params(params):
    """One-time (outside the per-call jit) padding + fusion of the six
    PyTorch parameter tensors into three lane-dense arrays.

    params = (wihx (In,H), wihh (H,H), bih (1,H), wiox (In,O), wioh (H,O), bio (1,O))
    with cat(x, h) @ W.T == x @ Wx + h @ Wh convention.
    """
    wihx, wihh, bih, wiox, wioh, bio = [p.astype(jnp.float32) for p in params]
    In, H = wihx.shape
    O = wiox.shape[1]
    Inp = _round_up(In, _LANE)
    Hp = _round_up(H, _LANE)
    Op = _round_up(O, _LANE)

    # [Wx_ih | Wx_io] : (Inp, Hp+Op), zero in all padded rows/cols.
    wx_cat = jnp.zeros((Inp, Hp + Op), jnp.float32)
    wx_cat = wx_cat.at[:In, :H].set(wihx).at[:In, Hp:Hp + O].set(wiox)

    # [Wh_ih | Wh_io] : (Hp, Hp+Op).
    wh_cat = jnp.zeros((Hp, Hp + Op), jnp.float32)
    wh_cat = wh_cat.at[:H, :H].set(wihh).at[:H, Hp:Hp + O].set(wioh)

    # [b_ih | b_io | mask] : padded output lanes get -1e30 -> softmax mask
    # baked into the bias (padded weight lanes are zero, so bias carries it).
    b_cat = jnp.zeros((1, Hp + Op), jnp.float32)
    b_cat = b_cat.at[:, Hp + O:].set(_NEG_BIG)
    b_cat = b_cat.at[:, :H].set(bih)
    b_cat = b_cat.at[:, Hp:Hp + O].set(bio)

    prepared = (wx_cat, wh_cat, b_cat)
    dims = (In, H, O, Inp, Hp, Op)
    return prepared, dims


@functools.partial(jax.jit, static_argnames=("hidden_num", "dims"))
def multi_layers_rnn_forward(x, h, prepared, *, hidden_num: int, dims):
    """Pallas forward. x: (B, In), h: (B, H).
    Returns (log_probs (B, O), hidden (B, H))."""
    assert hidden_num >= 1, "hidden_num must be >= 1 (matches PyTorch module)"
    wx_cat, wh_cat, b_cat = prepared
    In, H, O, Inp, Hp, Op = dims
    B = x.shape[0]
    Bp = _round_up(B, _SUBLANE)

    # Per-call activation padding (zeros are inert through the linear layers;
    # the output mask lives in the bias).
    xp = _pad2(x.astype(jnp.float32), Bp, Inp)
    hp = _pad2(h.astype(jnp.float32), Bp, Hp)

    kernel = functools.partial(_rnn_kernel, hidden_num=hidden_num, hp=Hp)
    vmem = pl.BlockSpec(memory_space=pltpu.MemorySpace.VMEM)
    out_shape = (jax.ShapeDtypeStruct((Bp, Op), jnp.float32),
                 jax.ShapeDtypeStruct((Bp, Hp), jnp.float32))

    out_p, hid_p = pl.pallas_call(
        kernel,
        out_shape=out_shape,
        in_specs=[vmem] * 5,
        out_specs=(vmem, vmem),
        # Padded hidden-state input (arg 1) is reused for the hidden output
        # (output 1): same (Bp, Hp) f32 buffer, saves an HBM allocation.
        input_output_aliases={1: 1},
    )(xp, hp, wx_cat, wh_cat, b_cat)

    # Slice back to the logical shapes.
    return out_p[:B, :O], hid_p[:B, :H]


def _reference_forward(x, h, params, *, hidden_num: int):
    """Pure-JAX reference mirroring the PyTorch module."""
    wihx, wihh, bih, wiox, wioh, bio = params
    combined = None
    for _ in range(hidden_num):
        combined = jnp.concatenate([x, h], axis=1)
        h = combined @ jnp.concatenate([wihx, wihh], axis=0) + bih
    logits = combined @ jnp.concatenate([wiox, wioh], axis=0) + bio
    log_probs = jax.nn.log_softmax(logits, axis=1)
    return log_probs, h


if __name__ == "__main__":
    # Small shapes implied by the module: input (B, input_size), hidden (B, hidden_size)
    B = 2
    INPUT_SIZE = 16
    HIDDEN_SIZE = 32
    OUTPUT_SIZE = 8
    HIDDEN_NUM = 3

    key = jax.random.PRNGKey(0)
    kx, kh, k1, k2, k3, k4, k5, k6 = jax.random.split(key, 8)

    x = jax.random.normal(kx, (B, INPUT_SIZE), dtype=jnp.float32)
    h = jax.random.normal(kh, (B, HIDDEN_SIZE), dtype=jnp.float32)

    # Deterministic parameter init (shapes match nn.Linear of the module,
    # pre-transposed / pre-split so cat(x,h) @ W.T == x @ Wx + h @ Wh).
    # i2h: Linear(input_size + hidden_size, hidden_size)
    # i2o: Linear(input_size + hidden_size, output_size)
    scale = 0.1
    wihx = scale * jax.random.normal(k1, (INPUT_SIZE, HIDDEN_SIZE), dtype=jnp.float32)
    wihh = scale * jax.random.normal(k2, (HIDDEN_SIZE, HIDDEN_SIZE), dtype=jnp.float32)
    bih = scale * jax.random.normal(k3, (1, HIDDEN_SIZE), dtype=jnp.float32)
    wiox = scale * jax.random.normal(k4, (INPUT_SIZE, OUTPUT_SIZE), dtype=jnp.float32)
    wioh = scale * jax.random.normal(k5, (HIDDEN_SIZE, OUTPUT_SIZE), dtype=jnp.float32)
    bio = scale * jax.random.normal(k6, (1, OUTPUT_SIZE), dtype=jnp.float32)
    params = (wihx, wihh, bih, wiox, wioh, bio)

    # One-time weight preparation (padding + fusion), outside the forward jit.
    prepared, dims = prepare_params(params)
    prepared = jax.block_until_ready(prepared)

    out, hid = multi_layers_rnn_forward(x, h, prepared,
                                        hidden_num=HIDDEN_NUM, dims=dims)
    out = jax.block_until_ready(out)
    hid = jax.block_until_ready(hid)

    ref_out, ref_hid = _reference_forward(x, h, params, hidden_num=HIDDEN_NUM)
    assert out.shape == (B, OUTPUT_SIZE) and hid.shape == (B, HIDDEN_SIZE)
    assert jnp.allclose(out, ref_out, atol=1e-5, rtol=1e-5)
    assert jnp.allclose(hid, ref_hid, atol=1e-5, rtol=1e-5)

    print("KERNEL_OK")
</pallas_src>

<mosaic_0001>
module attributes {stable_mosaic.version = 11 : i64} {
  func.func @_rnn_kernel(%arg0: memref<8x128xf32, #tpu.memory_space<vmem>>, %arg1: memref<8x128xf32, #tpu.memory_space<vmem>>, %arg2: memref<128x256xf32, #tpu.memory_space<vmem>>, %arg3: memref<128x256xf32, #tpu.memory_space<vmem>>, %arg4: memref<1x256xf32, #tpu.memory_space<vmem>>, %arg5: memref<8x128xf32, #tpu.memory_space<vmem>>, %arg6: memref<8x128xf32, #tpu.memory_space<vmem>>) attributes {dimension_semantics = [], scalar_prefetch = 0 : i64, scratch_operands = 0 : i64, tpu.core_type = #tpu.core_type<tc>} {
    %c0 = arith.constant 0 : index
    %c0_0 = arith.constant 0 : index
    %0 = vector.load %arg0[%c0, %c0_0] : memref<8x128xf32, #tpu.memory_space<vmem>>, vector<8x128xf32>
    %c0_1 = arith.constant 0 : index
    %c0_2 = arith.constant 0 : index
    %1 = vector.load %arg1[%c0_1, %c0_2] : memref<8x128xf32, #tpu.memory_space<vmem>>, vector<8x128xf32>
    %c0_3 = arith.constant 0 : index
    %c0_4 = arith.constant 0 : index
    %2 = vector.load %arg3[%c0_3, %c0_4] : memref<128x256xf32, #tpu.memory_space<vmem>>, vector<128x256xf32>
    %c0_5 = arith.constant 0 : index
    %c0_6 = arith.constant 0 : index
    %3 = vector.load %arg2[%c0_5, %c0_6] : memref<128x256xf32, #tpu.memory_space<vmem>>, vector<128x256xf32>
    %cst = arith.constant dense<0.000000e+00> : vector<8x256xf32>
    %4 = tpu.matmul %0, %3, %cst {dimension_numbers = #tpu.dot_dimension_numbers<[1], [0], [0], [1], [0, 0, 1, 1], [], []>} : vector<8x128xf32>, vector<128x256xf32>, vector<8x256xf32> -> vector<8x256xf32>
    %c0_7 = arith.constant 0 : index
    %c0_8 = arith.constant 0 : index
    %5 = vector.load %arg4[%c0_7, %c0_8] : memref<1x256xf32, #tpu.memory_space<vmem>>, vector<1x256xf32>
    %6 = vector.broadcast %5 : vector<1x256xf32> to vector<8x256xf32>
    %7 = arith.addf %4, %6 : vector<8x256xf32>
    %8 = vector.extract_strided_slice %7 {offsets = [0, 0], sizes = [8, 128], strides = [1, 1]} : vector<8x256xf32> to vector<8x128xf32>
    %9 = vector.extract_strided_slice %7 {offsets = [0, 128], sizes = [8, 128], strides = [1, 1]} : vector<8x256xf32> to vector<8x128xf32>
    %10 = vector.extract_strided_slice %2 {offsets = [0, 0], sizes = [128, 128], strides = [1, 1]} : vector<128x256xf32> to vector<128x128xf32>
    %cst_9 = arith.constant dense<0.000000e+00> : vector<8x128xf32>
    %11 = tpu.matmul %1, %10, %cst_9 {dimension_numbers = #tpu.dot_dimension_numbers<[1], [0], [0], [1], [0, 0, 1, 1], [], []>} : vector<8x128xf32>, vector<128x128xf32>, vector<8x128xf32> -> vector<8x128xf32>
    %12 = arith.addf %8, %11 : vector<8x128xf32>
    %cst_10 = arith.constant dense<0.000000e+00> : vector<8x128xf32>
    %13 = tpu.matmul %12, %10, %cst_10 {dimension_numbers = #tpu.dot_dimension_numbers<[1], [0], [0], [1], [0, 0, 1, 1], [], []>} : vector<8x128xf32>, vector<128x128xf32>, vector<8x128xf32> -> vector<8x128xf32>
    %14 = arith.addf %8, %13 : vector<8x128xf32>
    %cst_11 = arith.constant dense<0.000000e+00> : vector<8x256xf32>
    %15 = tpu.matmul %14, %2, %cst_11 {dimension_numbers = #tpu.dot_dimension_numbers<[1], [0], [0], [1], [0, 0, 1, 1], [], []>} : vector<8x128xf32>, vector<128x256xf32>, vector<8x256xf32> -> vector<8x256xf32>
    %16 = vector.extract_strided_slice %15 {offsets = [0, 0], sizes = [8, 128], strides = [1, 1]} : vector<8x256xf32> to vector<8x128xf32>
    %17 = arith.addf %8, %16 : vector<8x128xf32>
    %c0_12 = arith.constant 0 : index
    %c0_13 = arith.constant 0 : index
    %18 = vector.load %arg6[%c0_12, %c0_13] : memref<8x128xf32, #tpu.memory_space<vmem>>, vector<8x128xf32>
    tpu.vector_store %arg6[%c0_12, %c0_13], %17 {strides = array<i32>} : memref<8x128xf32, #tpu.memory_space<vmem>>, vector<8x128xf32>,
    %19 = vector.extract_strided_slice %15 {offsets = [0, 128], sizes = [8, 128], strides = [1, 1]} : vector<8x256xf32> to vector<8x128xf32>
    %20 = arith.addf %9, %19 : vector<8x128xf32>
    %cst_14 = arith.constant dense<0xFF800000> : vector<8xf32>
    %21 = vector.multi_reduction <maximumf>, %20, %cst_14 [1] : vector<8x128xf32> to vector<8xf32>
    %22 = vector.shape_cast %21 : vector<8xf32> to vector<8x1xf32>
    %23 = vector.broadcast %22 : vector<8x1xf32> to vector<8x128xf32>
    %24 = arith.subf %20, %23 : vector<8x128xf32>
    %25 = math.exp %24 : vector<8x128xf32>
    %cst_15 = arith.constant dense<0.000000e+00> : vector<8xf32>
    %26 = vector.multi_reduction <add>, %25, %cst_15 [1] : vector<8x128xf32> to vector<8xf32>
    %27 = vector.shape_cast %26 : vector<8xf32> to vector<8x1xf32>
    %28 = math.log %27 : vector<8x1xf32>
    %29 = vector.broadcast %28 : vector<8x1xf32> to vector<8x128xf32>
    %30 = arith.subf %24, %29 : vector<8x128xf32>
    %c0_16 = arith.constant 0 : index
    %c0_17 = arith.constant 0 : index
    %31 = vector.load %arg5[%c0_16, %c0_17] : memref<8x128xf32, #tpu.memory_space<vmem>>, vector<8x128xf32>
    tpu.vector_store %arg5[%c0_16, %c0_17], %30 {strides = array<i32>} : memref<8x128xf32, #tpu.memory_space<vmem>>, vector<8x128xf32>,
    return
  }
}

</mosaic_0001>

<llo_original>
// kernel: multi_layers_rnn_forward.1
$region0: #{multi_layers_rnn_forward.1}
  #allocation0 [shape = 'u32[]', space=smem, size = 0x4, offset = 0x4, fixed_abs, tag = 'smem constant byte address 0x4 - core index']
  #allocation1 [shape = 'u32[72,128]{1,0:T(1,128)}', space=vmem, size = 0x9000, scoped, tag = 'internal scratch']
  %s0 = inlined_call_operand.vmem [shape: f32[8,128], index: 0, kind: input, shape index: {}]
  %s1 = inlined_call_operand.vmem [shape: f32[8,128], index: 1, kind: input, shape index: {}, may-alias: {1,6}]
  %s2 = inlined_call_operand.hbm [shape: f32[128,256], index: 2, kind: input, shape index: {}]
  %s3 = inlined_call_operand.hbm [shape: f32[128,256], index: 3, kind: input, shape index: {}]
  %s4 = inlined_call_operand.vmem [shape: f32[1,256], index: 4, kind: input, shape index: {}]
  %s5 = inlined_call_operand.vmem [shape: f32[8,128], index: 5, kind: output, shape index: {0}]
  %s6 = inlined_call_operand.vmem [shape: f32[8,128], index: 6, kind: output, shape index: {1}, may-alias: {1,6}]
  %7 = xla_tuple %s5, %s6
  %s8 = sld [smem:[#allocation0]]
  $region46: #{multi_layers_rnn_forward.1} parent=0
    _
  %s10 = ssub.s32 1, %s8
  %s11 = scalar_select 0, %s10, %s8
  $region1: #{multi_layers_rnn_forward.1} parent=0
    #allocation2 [shape = 'u8[131072]{0}', space=vmem, size = 0x20000, scoped, tag = 'input window, operand 2, single buffered']
    #allocation3 [shape = 's32[1]{0}', space=sflag, size = 0x4, scoped, tag = 'scoped memory for multi_layers_rnn_forward.1']
    #allocation4 [shape = 'u8[131072]{0}', space=vmem, size = 0x20000, scoped, tag = 'input window, operand 3, single buffered']
    #allocation5 [shape = 's32[1]{0}', space=sflag, size = 0x4, scoped, tag = 'scoped memory for multi_layers_rnn_forward.1']
    %12 = vsyncpa [#allocation3], 0
    %13 = vsyncpa [#allocation5], 0
    // Predicated region
    $region2: #{multi_layers_rnn_forward.1} parent=1 // pred_check
      _
    $region3: #{multi_layers_rnn_forward.1} parent=1 // pred_check_branch
      %15 = sbr.rel (0) target = $region5
    $region4: #{multi_layers_rnn_forward.1} parent=1 // pred_region
      _
    $region5: #{multi_layers_rnn_forward.1} parent=1 // pred_fallthru
      _
    // Predicated region
    $region6: #{multi_layers_rnn_forward.1} parent=1 // pred_check
      _
    $region7: #{multi_layers_rnn_forward.1} parent=1 // pred_check_branch
      %17 = sbr.rel (0) target = $region9
    $region8: #{multi_layers_rnn_forward.1} parent=1 // pred_region
      _
    $region9: #{multi_layers_rnn_forward.1} parent=1 // pred_fallthru
      _
    // Predicated region
    $region10: #{multi_layers_rnn_forward.1} parent=1 // pred_check
      _
    $region11: #{multi_layers_rnn_forward.1} parent=1 // pred_check_branch
      %19 = sbr.rel (0) target = $region13
    $region12: #{multi_layers_rnn_forward.1} parent=1 // pred_region
      %21 = vsyncadd [#allocation3], 0
      %s22 = sshll.u32 %s2, 4
      %s23 = int_to_ptr.hbm [resolvable:$true] %s22
      %s24 = sshll.u32 [#allocation2], 4
      %s25 = int_to_ptr.vmem [resolvable:$true] %s24
      %30 = dma.hbm_to_vmem [thread:$0]  %s23, 4096, %s25, [#allocation3], 256, 256, 16
    $region13: #{multi_layers_rnn_forward.1} parent=1 // pred_fallthru
      _
    // Predicated region
    $region14: #{multi_layers_rnn_forward.1} parent=1 // pred_check
      _
    $region15: #{multi_layers_rnn_forward.1} parent=1 // pred_check_branch
      %32 = sbr.rel (0) target = $region17
    $region16: #{multi_layers_rnn_forward.1} parent=1 // pred_region
      %34 = vsyncadd [#allocation5], 0
      %s35 = sshll.u32 %s3, 4
      %s36 = int_to_ptr.hbm [resolvable:$true] %s35
      %s37 = sshll.u32 [#allocation4], 4
      %s38 = int_to_ptr.vmem [resolvable:$true] %s37
      %43 = dma.hbm_to_vmem [thread:$0]  %s36, 4096, %s38, [#allocation5], 256, 256, 16
    $region17: #{multi_layers_rnn_forward.1} parent=1 // pred_fallthru
      _
    // Predicated region
    $region18: #{multi_layers_rnn_forward.1} parent=1 // pred_check
      _
    $region19: #{multi_layers_rnn_forward.1} parent=1 // pred_check_branch
      %45 = sbr.rel (0) target = $region21
    $region20: #{multi_layers_rnn_forward.1} parent=1 // pred_region
      _
    $region21: #{multi_layers_rnn_forward.1} parent=1 // pred_fallthru
      _
    // Predicated region
    $region22: #{multi_layers_rnn_forward.1} parent=1 // pred_check
      _
    $region23: #{multi_layers_rnn_forward.1} parent=1 // pred_check_branch
      %47 = sbr.rel (0) target = $region25
    $region24: #{multi_layers_rnn_forward.1} parent=1 // pred_region
      %49 = dma.done [#allocation3], 4096
    $region25: #{multi_layers_rnn_forward.1} parent=1 // pred_fallthru
      _
    // Predicated region
    $region26: #{multi_layers_rnn_forward.1} parent=1 // pred_check
      _
    $region27: #{multi_layers_rnn_forward.1} parent=1 // pred_check_branch
      %51 = sbr.rel (0) target = $region29
    $region28: #{multi_layers_rnn_forward.1} parent=1 // pred_region
      %53 = dma.done [#allocation5], 4096
    $region29: #{multi_layers_rnn_forward.1} parent=1 // pred_fallthru
      _
    %v54 = vld [vmem:[%s0] sm:$0xff]
    %v55 = vld [vmem:[%s1] sm:$0xff]
    %v56 = vld [vmem:[#allocation4] sm:$0xff]
    %v57 = vld [vmem:[#allocation4 + $0x8] sm:$0xff]
    %v58 = vld [vmem:[#allocation4 + $0x10] sm:$0xff]
    %v59 = vld [vmem:[#allocation4 + $0x18] sm:$0xff]
    %v60 = vld [vmem:[#allocation4 + $0x20] sm:$0xff]
    %v61 = vld [vmem:[#allocation4 + $0x28] sm:$0xff]
    %v62 = vld [vmem:[#allocation4 + $0x30] sm:$0xff]
    %v63 = vld [vmem:[#allocation4 + $0x38] sm:$0xff]
    %v64 = vld [vmem:[#allocation4 + $0x40] sm:$0xff]
    %v65 = vld [vmem:[#allocation4 + $0x48] sm:$0xff]
    %v66 = vld [vmem:[#allocation4 + $0x50] sm:$0xff]
    %v67 = vld [vmem:[#allocation4 + $0x58] sm:$0xff]
    %v68 = vld [vmem:[#allocation4 + $0x60] sm:$0xff]
    %v69 = vld [vmem:[#allocation4 + $0x68] sm:$0xff]
    %v70 = vld [vmem:[#allocation4 + $0x70] sm:$0xff]
    %v71 = vld [vmem:[#allocation4 + $0x78] sm:$0xff]
    %v72 = vld [vmem:[#allocation4 + $0x80] sm:$0xff]
    %v73 = vld [vmem:[#allocation4 + $0x88] sm:$0xff]
    %v74 = vld [vmem:[#allocation4 + $0x90] sm:$0xff]
    %v75 = vld [vmem:[#allocation4 + $0x98] sm:$0xff]
    %v76 = vld [vmem:[#allocation4 + $0xa0] sm:$0xff]
    %v77 = vld [vmem:[#allocation4 + $0xa8] sm:$0xff]
    %v78 = vld [vmem:[#allocation4 + $0xb0] sm:$0xff]
    %v79 = vld [vmem:[#allocation4 + $0xb8] sm:$0xff]
    %v80 = vld [vmem:[#allocation4 + $0xc0] sm:$0xff]
    %v81 = vld [vmem:[#allocation4 + $0xc8] sm:$0xff]
    %v82 = vld [vmem:[#allocation4 + $0xd0] sm:$0xff]
    %v83 = vld [vmem:[#allocation4 + $0xd8] sm:$0xff]
    %v84 = vld [vmem:[#allocation4 + $0xe0] sm:$0xff]
    %v85 = vld [vmem:[#allocation4 + $0xe8] sm:$0xff]
    %v86 = vld [vmem:[#allocation4 + $0xf0] sm:$0xff]
    %v87 = vld [vmem:[#allocation4 + $0xf8] sm:$0xff]
    %v88 = vld [vmem:[#allocation2] sm:$0xff]
    %v89 = vld [vmem:[#allocation2 + $0x8] sm:$0xff]
    %v90 = vld [vmem:[#allocation2 + $0x10] sm:$0xff]
    %v91 = vld [vmem:[#allocation2 + $0x18] sm:$0xff]
    %v92 = vld [vmem:[#allocation2 + $0x20] sm:$0xff]
    %v93 = vld [vmem:[#allocation2 + $0x28] sm:$0xff]
    %v94 = vld [vmem:[#allocation2 + $0x30] sm:$0xff]
    %v95 = vld [vmem:[#allocation2 + $0x38] sm:$0xff]
    %v96 = vld [vmem:[#allocation2 + $0x40] sm:$0xff]
    %v97 = vld [vmem:[#allocation2 + $0x48] sm:$0xff]
    %v98 = vld [vmem:[#allocation2 + $0x50] sm:$0xff]
    %v99 = vld [vmem:[#allocation2 + $0x58] sm:$0xff]
    %v100 = vld [vmem:[#allocation2 + $0x60] sm:$0xff]
    %v101 = vld [vmem:[#allocation2 + $0x68] sm:$0xff]
    %v102 = vld [vmem:[#allocation2 + $0x70] sm:$0xff]
    %v103 = vld [vmem:[#allocation2 + $0x78] sm:$0xff]
    %v104 = vld [vmem:[#allocation2 + $0x80] sm:$0xff]
    %v105 = vld [vmem:[#allocation2 + $0x88] sm:$0xff]
    %v106 = vld [vmem:[#allocation2 + $0x90] sm:$0xff]
    %v107 = vld [vmem:[#allocation2 + $0x98] sm:$0xff]
    %v108 = vld [vmem:[#allocation2 + $0xa0] sm:$0xff]
    %v109 = vld [vmem:[#allocation2 + $0xa8] sm:$0xff]
    %v110 = vld [vmem:[#allocation2 + $0xb0] sm:$0xff]
    %v111 = vld [vmem:[#allocation2 + $0xb8] sm:$0xff]
    %v112 = vld [vmem:[#allocation2 + $0xc0] sm:$0xff]
    %v113 = vld [vmem:[#allocation2 + $0xc8] sm:$0xff]
    %v114 = vld [vmem:[#allocation2 + $0xd0] sm:$0xff]
    %v115 = vld [vmem:[#allocation2 + $0xd8] sm:$0xff]
    %v116 = vld [vmem:[#allocation2 + $0xe0] sm:$0xff]
    %v117 = vld [vmem:[#allocation2 + $0xe8] sm:$0xff]
    %v118 = vld [vmem:[#allocation2 + $0xf0] sm:$0xff]
    %v119 = vld [vmem:[#allocation2 + $0xf8] sm:$0xff]
    %v120 = vld [vmem:[%s4] sm:$0x3]
    %v122 = vperm.slane %v120, 0
    %v123 = vperm.slane %v120, 1
    %126 = vmatpush.msra.mxu0 %v118
    %127 = vmatpush.msra.mxu0 %v116
    %128 = vmatpush.msra.mxu0 %v114
    %129 = vmatpush.msra.mxu0 %v112
    %130 = vmatpush.msra.mxu0 %v110
    %131 = vmatpush.msra.mxu0 %v108
    %132 = vmatpush.msra.mxu0 %v106
    %133 = vmatpush.msra.mxu0 %v104
    %134 = vmatpush.msra.mxu0 %v102
    %135 = vmatpush.msra.mxu0 %v100
    %136 = vmatpush.msra.mxu0 %v98
    %137 = vmatpush.msra.mxu0 %v96
    %138 = vmatpush.msra.mxu0 %v94
    %139 = vmatpush.msra.mxu0 %v92
    %140 = vmatpush.msra.mxu0 %v90
    %141 = vmatpush.msra.mxu0 %v88
    %142 = vmatmul.f32.gmra.mxu0 %v54
    %v143 = vpop.f32.mrf.mxu0
    %v144 = vadd.f32 %v122, %v143
    %145 = vdwg.mxu0
    %146 = vmatpush.msra.mxu0 %v119
    %147 = vmatpush.msra.mxu0 %v117
    %148 = vmatpush.msra.mxu0 %v115
    %149 = vmatpush.msra.mxu0 %v113
    %150 = vmatpush.msra.mxu0 %v111
    %151 = vmatpush.msra.mxu0 %v109
    %152 = vmatpush.msra.mxu0 %v107
    %153 = vmatpush.msra.mxu0 %v105
    %154 = vmatpush.msra.mxu0 %v103
    %155 = vmatpush.msra.mxu0 %v101
    %156 = vmatpush.msra.mxu0 %v99
    %157 = vmatpush.msra.mxu0 %v97
    %158 = vmatpush.msra.mxu0 %v95
    %159 = vmatpush.msra.mxu0 %v93
    %160 = vmatpush.msra.mxu0 %v91
    %161 = vmatpush.msra.mxu0 %v89
    %162 = vmatmul.f32.gmra.mxu0 %v54
    %v163 = vpop.f32.mrf.mxu0
    %v164 = vadd.f32 %v123, %v163
    %165 = vdwg.mxu0
    %166 = vmatpush.msra.mxu0 %v86
    %167 = vmatpush.msra.mxu0 %v84
    %168 = vmatpush.msra.mxu0 %v82
    %169 = vmatpush.msra.mxu0 %v80
    %170 = vmatpush.msra.mxu0 %v78
    %171 = vmatpush.msra.mxu0 %v76
    %172 = vmatpush.msra.mxu0 %v74
    %173 = vmatpush.msra.mxu0 %v72
    %174 = vmatpush.msra.mxu0 %v70
    %175 = vmatpush.msra.mxu0 %v68
    %176 = vmatpush.msra.mxu0 %v66
    %177 = vmatpush.msra.mxu0 %v64
    %178 = vmatpush.msra.mxu0 %v62
    %179 = vmatpush.msra.mxu0 %v60
    %180 = vmatpush.msra.mxu0 %v58
    %181 = vmatpush.msra.mxu0 %v56
    %182 = vmatmul.f32.gmra.mxu0 %v55
    %v183 = vpop.f32.mrf.mxu0
    %v184 = vadd.f32 0.0, %v183
    %185 = vdwg.mxu0
    %v186 = vadd.f32 %v144, %v184
    %187 = vmatpush.msra.mxu0 %v86
    %188 = vmatpush.msra.mxu0 %v84
    %189 = vmatpush.msra.mxu0 %v82
    %190 = vmatpush.msra.mxu0 %v80
    %191 = vmatpush.msra.mxu0 %v78
    %192 = vmatpush.msra.mxu0 %v76
    %193 = vmatpush.msra.mxu0 %v74
    %194 = vmatpush.msra.mxu0 %v72
    %195 = vmatpush.msra.mxu0 %v70
    %196 = vmatpush.msra.mxu0 %v68
    %197 = vmatpush.msra.mxu0 %v66
    %198 = vmatpush.msra.mxu0 %v64
    %199 = vmatpush.msra.mxu0 %v62
    %200 = vmatpush.msra.mxu0 %v60
    %201 = vmatpush.msra.mxu0 %v58
    %202 = vmatpush.msra.mxu0 %v56
    %203 = vmatmul.f32.gmra.mxu0 %v186
    %v204 = vpop.f32.mrf.mxu0
    %v205 = vadd.f32 0.0, %v204
    %206 = vdwg.mxu0
    %v207 = vadd.f32 %v144, %v205
    %208 = vmatpush.msra.mxu0 %v86
    %209 = vmatpush.msra.mxu0 %v84
    %210 = vmatpush.msra.mxu0 %v82
    %211 = vmatpush.msra.mxu0 %v80
    %212 = vmatpush.msra.mxu0 %v78
    %213 = vmatpush.msra.mxu0 %v76
    %214 = vmatpush.msra.mxu0 %v74
    %215 = vmatpush.msra.mxu0 %v72
    %216 = vmatpush.msra.mxu0 %v70
    %217 = vmatpush.msra.mxu0 %v68
    %218 = vmatpush.msra.mxu0 %v66
    %219 = vmatpush.msra.mxu0 %v64
    %220 = vmatpush.msra.mxu0 %v62
    %221 = vmatpush.msra.mxu0 %v60
    %222 = vmatpush.msra.mxu0 %v58
    %223 = vmatpush.msra.mxu0 %v56
    %224 = vmatmul.f32.gmra.mxu0 %v207
    %v225 = vpop.f32.mrf.mxu0
    %v226 = vadd.f32 0.0, %v225
    %227 = vdwg.mxu0
    %228 = vmatpush.msra.mxu0 %v87
    %229 = vmatpush.msra.mxu0 %v85
    %230 = vmatpush.msra.mxu0 %v83
    %231 = vmatpush.msra.mxu0 %v81
    %232 = vmatpush.msra.mxu0 %v79
    %233 = vmatpush.msra.mxu0 %v77
    %234 = vmatpush.msra.mxu0 %v75
    %235 = vmatpush.msra.mxu0 %v73
    %236 = vmatpush.msra.mxu0 %v71
    %237 = vmatpush.msra.mxu0 %v69
    %238 = vmatpush.msra.mxu0 %v67
    %239 = vmatpush.msra.mxu0 %v65
    %240 = vmatpush.msra.mxu0 %v63
    %241 = vmatpush.msra.mxu0 %v61
    %242 = vmatpush.msra.mxu0 %v59
    %243 = vmatpush.msra.mxu0 %v57
    %244 = vmatmul.f32.gmra.mxu0 %v207
    %v245 = vpop.f32.mrf.mxu0
    %v246 = vadd.f32 0.0, %v245
    %247 = vdwg.mxu0
    %v248 = vadd.f32 %v144, %v226
    %249 = vst [vmem:[%s6] sm:$0xff] %v248
    %v250 = vadd.f32 %v164, %v246
    %251 = vmax.xlane.f32.xlu0 %v250
    %v252 = vpop.xlane.xlu0 %251
    %v253 = vsub.f32 %v250, %v252
    %v254 = vmul.f32 %v253, 1.442695
    %v255 = vpow.pop %v254
    %256 = vadd.xlane.f32.xlu0 %v255
    %v257 = vpop.xlane.xlu0 %256
    %v258 = vlog2.pop %v257
    %v259 = vmul.f32 %v258, 0.6931472
    %v260 = vsub.f32 %v253, %v259
    %261 = vst [vmem:[%s5] sm:$0xff] %v260
    // Predicated region
    $region30: #{multi_layers_rnn_forward.1} parent=1 // pred_check
      _
    $region31: #{multi_layers_rnn_forward.1} parent=1 // pred_check_branch
      %263 = sbr.rel (0) target = $region33
    $region32: #{multi_layers_rnn_forward.1} parent=1 // pred_region
      _
    $region33: #{multi_layers_rnn_forward.1} parent=1 // pred_fallthru
      _
    // Predicated region
    $region34: #{multi_layers_rnn_forward.1} parent=1 // pred_check
      _
    $region35: #{multi_layers_rnn_forward.1} parent=1 // pred_check_branch
      %265 = sbr.rel (0) target = $region37
    $region36: #{multi_layers_rnn_forward.1} parent=1 // pred_region
      _
    $region37: #{multi_layers_rnn_forward.1} parent=1 // pred_fallthru
      _
    // Predicated region
    $region38: #{multi_layers_rnn_forward.1} parent=1 // pred_check
      _
    $region39: #{multi_layers_rnn_forward.1} parent=1 // pred_check_branch
      %267 = sbr.rel (0) target = $region41
    $region40: #{multi_layers_rnn_forward.1} parent=1 // pred_region
      _
    $region41: #{multi_layers_rnn_forward.1} parent=1 // pred_fallthru
      _
    // Predicated region
    $region42: #{multi_layers_rnn_forward.1} parent=1 // pred_check
      _
    $region43: #{multi_layers_rnn_forward.1} parent=1 // pred_check_branch
      %269 = sbr.rel (0) target = $region45
    $region44: #{multi_layers_rnn_forward.1} parent=1 // pred_region
      _
    $region45: #{multi_layers_rnn_forward.1} parent=1 // pred_fallthru
      _
    %270 = vsyncpa [#allocation3], 1
    %271 = vsyncpa [#allocation5], 1

</llo_original>
